<compile_context>
chip_gen: v6e
topology: v6e:2x2x1
jax: 0.10.0
libtpu: 0.0.40
codegen_flags: <defaults>
</compile_context>

<pallas_src>
import math

import jax
import jax.numpy as jnp
from jax import lax
from jax.experimental import pallas as pl
from jax.experimental.pallas import tpu as pltpu


def _round_up(v, m):
    return ((v + m - 1) // m) * m


def _tile_and_pad(dim, target, align):
    """Pick a block size and the padded dim it divides.

    Prefers exact divisors of `dim` (multiples of `align`) so aligned
    production shapes need no HBM padding copy; falls back to padding."""
    dim = int(dim)
    if dim <= target:
        t = _round_up(dim, align)          # single block; at most align-1 pad
        return t, t
    target = max(align, (target // align) * align)
    if dim % align == 0:
        t = target
        floor = max(align, target // 2)    # don't accept tiny divisors
        while t >= floor:
            if dim % t == 0:
                return t, dim              # exact divisor: zero padding
            t -= align
    return target, _round_up(dim, target)


def _device_defaults():
    """(tm, tn, tk, vmem_limit_bytes) tuned per TPU generation."""
    kind = ""
    try:
        kind = jax.devices()[0].device_kind.lower()
    except Exception:
        pass
    if "v6" in kind:
        # v6e: 128 MiB VMEM, 918 TF/s -> needs ~1024-class tiles to leave the
        # HBM roofline; raise scoped VMEM well above the 32 MiB default.
        return 1024, 1024, 2048, 100 << 20
    if "v5 lite" in kind or "v5e" in kind:
        # v5e: default scoped VMEM is only 16 MiB of 128 MiB physical.
        return 512, 512, 1024, 64 << 20
    # v7x (only 64 MiB VMEM per TC) and unknown chips: conservative tiles.
    return 512, 512, 1024, 48 << 20


def _lora_linear_kernel(x_ref, w_ref, b_ref, aT_ref, lT_ref, o_ref,
                        acc_ref, p_ref):
    k = pl.program_id(2)

    @pl.when(k == 0)
    def _():
        acc_ref[...] = jnp.zeros_like(acc_ref)
        p_ref[...] = jnp.zeros_like(p_ref)

    # Base matmul: acc += x @ W^T. W kept in its (N, K) layout; the NT-form
    # dot_general contracts the K dims directly (no transpose copy), native
    # dtype operands into the MXU, f32 accumulation.
    acc_ref[...] += lax.dot_general(
        x_ref[...], w_ref[...],
        dimension_numbers=(((1,), (1,)), ((), ())),
        preferred_element_type=jnp.float32)

    # Rank-r LoRA accumulator: p += x @ A (A^T supplied as (r, K)); result is
    # only (tm, r) -- a few vregs -- instead of a (tn, tk) f32 delta per step.
    p_ref[...] += lax.dot_general(
        x_ref[...], aT_ref[...],
        dimension_numbers=(((1,), (1,)), ((), ())),
        preferred_element_type=jnp.float32)

    @pl.when(k == pl.num_programs(2) - 1)
    def _():
        # Apply the rank-r update once per output tile, in f32 (lT is f32 with
        # the scaling pre-folded), then the bias, then a single cast.
        lora = lax.dot_general(
            p_ref[...], lT_ref[...],
            dimension_numbers=(((1,), (1,)), ((), ())),
            preferred_element_type=jnp.float32)
        out = acc_ref[...] + lora + b_ref[...].astype(jnp.float32)
        o_ref[...] = out.astype(o_ref.dtype)


def lora_linear(x, weight, bias, lora_right, lora_left, lora_scaling, lora_dim,
                index=0, *, tm=None, tn=None, tk=None, vmem_limit_bytes=None,
                compute_dtype=None):
    """x: (..., K); weight: (N=rows, K=cols); bias: (N,) or None;
    lora_right: (inds, K, lora_dim); lora_left: (lora_dim, N).
    `index` must be a static Python int."""
    # TODO(synk): lora_dropout with p>0 (training mode) not implemented; the
    # module default p=0 is an Identity, which is what this kernel computes.
    # TODO(synk): a traced `index` would need PrefetchScalarGridSpec scalar
    # prefetch driving lora_right's index_map instead of this static slice.
    d_tm, d_tn, d_tk, d_vmem = _device_defaults()
    tm = d_tm if tm is None else tm
    tn = d_tn if tn is None else tn
    tk = d_tk if tk is None else tk
    vmem_limit_bytes = d_vmem if vmem_limit_bytes is None else vmem_limit_bytes

    orig_shape = x.shape
    K = orig_shape[-1]
    N = weight.shape[0]
    r = int(lora_dim)
    M = int(math.prod(orig_shape[:-1]))
    scale = float(lora_scaling) / float(lora_dim)

    x2 = x.reshape(M, K)
    # Tiny LoRA factors: transpose / fold the scale on the host (K*r and N*r
    # elements). lT is kept f32 so the rank-r finalize stays full precision.
    aT = lora_right[index].T.astype(x.dtype)                     # (r, K)
    lT = (lora_left.astype(jnp.float32) * scale).T               # (N, r) f32
    b2 = (bias if bias is not None
          else jnp.zeros((N,), weight.dtype)).reshape(1, N)

    if compute_dtype is not None:   # optional bf16 fast path for f32 inputs
        x2 = x2.astype(compute_dtype)
        weight = weight.astype(compute_dtype)
        aT = aT.astype(compute_dtype)

    # Tile selection: prefer exact divisors (no padded HBM copy of the weight
    # for aligned production shapes); clamp/pad small or ragged dims.
    tm, Mp = _tile_and_pad(M, tm, 8)
    tn, Np = _tile_and_pad(N, tn, 128)
    tk, Kp = _tile_and_pad(K, tk, 128)

    # Keep >=2 blocks on a "parallel" axis when possible so v7x's two
    # TensorCores both get work (no effect on 1-TC v5e/v6e).
    if Mp // tm == 1 and Np // tn == 1:
        if tn % 256 == 0:
            tn //= 2
        elif tm % 16 == 0:
            tm //= 2

    def _pad2(a, rows, cols):
        pr, pc = rows - a.shape[0], cols - a.shape[1]
        return a if (pr == 0 and pc == 0) else jnp.pad(a, ((0, pr), (0, pc)))

    x_p = _pad2(x2, Mp, Kp)
    w_p = _pad2(weight, Np, Kp)
    aT_p = _pad2(aT, r, Kp)
    lT_p = _pad2(lT, Np, r)
    b_p = _pad2(b2, 1, Np)

    grid = (Mp // tm, Np // tn, Kp // tk)
    out_p = pl.pallas_call(
        _lora_linear_kernel,
        out_shape=jax.ShapeDtypeStruct((Mp, Np), x.dtype),
        grid_spec=pltpu.PrefetchScalarGridSpec(
            num_scalar_prefetch=0,
            grid=grid,
            in_specs=[
                pl.BlockSpec((tm, tk), lambda i, j, k: (i, k)),   # x
                pl.BlockSpec((tn, tk), lambda i, j, k: (j, k)),   # W (N, K)
                pl.BlockSpec((1, tn), lambda i, j, k: (0, j)),    # bias
                pl.BlockSpec((r, tk), lambda i, j, k: (0, k)),    # A^T
                pl.BlockSpec((tn, r), lambda i, j, k: (j, 0)),    # (s*L)^T
            ],
            out_specs=pl.BlockSpec((tm, tn), lambda i, j, k: (i, j)),
            scratch_shapes=[
                pltpu.VMEM((tm, tn), jnp.float32),   # main f32 accumulator
                pltpu.VMEM((tm, r), jnp.float32),    # rank-r LoRA accumulator
            ],
        ),
        compiler_params=pltpu.CompilerParams(
            dimension_semantics=("parallel", "parallel", "arbitrary"),
            vmem_limit_bytes=vmem_limit_bytes),
    )(x_p, w_p, b_p, aT_p, lT_p)

    return out_p[:M, :N].reshape(*orig_shape[:-1], N)


if __name__ == "__main__":
    # Small shapes consistent with the module: (batch, seq, in_features).
    batch, seq = 2, 8
    in_features = 32    # columns
    out_features = 48   # rows
    lora_dim = 4
    inds = 10
    lora_scaling = 1.0

    key = jax.random.PRNGKey(0)
    kx, kw, kb, kr, kl = jax.random.split(key, 5)

    x = jax.random.normal(kx, (batch, seq, in_features), jnp.float32)
    weight = jax.random.normal(kw, (out_features, in_features), jnp.float32) * 0.1
    bias = jax.random.normal(kb, (out_features,), jnp.float32) * 0.1
    # Shapes mirror nn.Parameter(torch.zeros(inds, columns, lora_dim)) and
    # nn.Parameter(torch.zeros(lora_dim, rows)); nonzero values so the LoRA
    # path is actually exercised.
    lora_right = jax.random.normal(kr, (inds, in_features, lora_dim), jnp.float32) * 0.1
    lora_left = jax.random.normal(kl, (lora_dim, out_features), jnp.float32) * 0.1

    out = lora_linear(x, weight, bias, lora_right, lora_left,
                      lora_scaling, lora_dim, index=0)
    out = jax.block_until_ready(out)

    # Pure-JAX reference (same math as the PyTorch forward, unfused branch).
    ref = (x @ weight.T + bias
           + (x @ lora_right[0]) @ lora_left * (lora_scaling / lora_dim))
    assert out.shape == (batch, seq, out_features)
    assert jnp.allclose(out, ref, atol=1e-5, rtol=1e-5)

    print("KERNEL_OK")
</pallas_src>

<mosaic_0001>
module attributes {stable_mosaic.version = 11 : i64} {
  func.func @_lora_linear_kernel(%arg0: i32, %arg1: i32, %arg2: i32, %arg3: memref<8x128xf32, #tpu.memory_space<vmem>>, %arg4: memref<128x128xf32, #tpu.memory_space<vmem>>, %arg5: memref<1x128xf32, #tpu.memory_space<vmem>>, %arg6: memref<4x128xf32, #tpu.memory_space<vmem>>, %arg7: memref<128x4xf32, #tpu.memory_space<vmem>>, %arg8: memref<8x128xf32, #tpu.memory_space<vmem>>, %arg9: memref<8x128xf32, #tpu.memory_space<vmem>>, %arg10: memref<8x4xf32, #tpu.memory_space<vmem>>) attributes {dimension_semantics = [#tpu.dimension_semantics<parallel>, #tpu.dimension_semantics<parallel>, #tpu.dimension_semantics<arbitrary>], iteration_bounds = array<i64: 2, 1, 1>, scalar_prefetch = 0 : i64, scratch_operands = 2 : i64, tpu.core_type = #tpu.core_type<tc>, window_params = [{transform_indices = @transform_0, window_bounds = array<i64: 8, 128>}, {transform_indices = @transform_1, window_bounds = array<i64: 128, 128>}, {transform_indices = @transform_2, window_bounds = array<i64: 1, 128>}, {transform_indices = @transform_3, window_bounds = array<i64: 4, 128>}, {transform_indices = @transform_4, window_bounds = array<i64: 128, 4>}, {transform_indices = @transform_5, window_bounds = array<i64: 8, 128>}]} {
    %c0_i32 = arith.constant 0 : i32
    %0 = arith.cmpi eq, %arg2, %c0_i32 : i32
    %1 = arith.extui %0 : i1 to i32
    %c0_i32_0 = arith.constant 0 : i32
    %2 = arith.cmpi ne, %1, %c0_i32_0 : i32
    scf.if %2 {
      %cst_19 = arith.constant 0.000000e+00 : f32
      %18 = vector.broadcast %cst_19 : f32 to vector<8x128xf32>
      %c0_20 = arith.constant 0 : index
      %c0_21 = arith.constant 0 : index
      %19 = vector.load %arg9[%c0_20, %c0_21] : memref<8x128xf32, #tpu.memory_space<vmem>>, vector<8x128xf32>
      tpu.vector_store %arg9[%c0_20, %c0_21], %18 {strides = array<i32>} : memref<8x128xf32, #tpu.memory_space<vmem>>, vector<8x128xf32>,
      %cst_22 = arith.constant 0.000000e+00 : f32
      %20 = vector.broadcast %cst_22 : f32 to vector<8x4xf32>
      %c0_23 = arith.constant 0 : index
      %c0_24 = arith.constant 0 : index
      %21 = vector.load %arg10[%c0_23, %c0_24] : memref<8x4xf32, #tpu.memory_space<vmem>>, vector<8x4xf32>
      tpu.vector_store %arg10[%c0_23, %c0_24], %20 {strides = array<i32>} : memref<8x4xf32, #tpu.memory_space<vmem>>, vector<8x4xf32>,
    } else {
    }
    %c0 = arith.constant 0 : index
    %c0_1 = arith.constant 0 : index
    %3 = vector.load %arg9[%c0, %c0_1] : memref<8x128xf32, #tpu.memory_space<vmem>>, vector<8x128xf32>
    %c0_2 = arith.constant 0 : index
    %c0_3 = arith.constant 0 : index
    %4 = vector.load %arg3[%c0_2, %c0_3] : memref<8x128xf32, #tpu.memory_space<vmem>>, vector<8x128xf32>
    %c0_4 = arith.constant 0 : index
    %c0_5 = arith.constant 0 : index
    %5 = vector.load %arg4[%c0_4, %c0_5] : memref<128x128xf32, #tpu.memory_space<vmem>>, vector<128x128xf32>
    %cst = arith.constant dense<0.000000e+00> : vector<8x128xf32>
    %6 = tpu.matmul %4, %5, %cst {dimension_numbers = #tpu.dot_dimension_numbers<[1], [1], [0], [0], [0, 0, 1, 0], [], []>} : vector<8x128xf32>, vector<128x128xf32>, vector<8x128xf32> -> vector<8x128xf32>
    %7 = arith.addf %3, %6 : vector<8x128xf32>
    %c0_6 = arith.constant 0 : index
    %c0_7 = arith.constant 0 : index
    %8 = vector.load %arg9[%c0_6, %c0_7] : memref<8x128xf32, #tpu.memory_space<vmem>>, vector<8x128xf32>
    tpu.vector_store %arg9[%c0_6, %c0_7], %7 {strides = array<i32>} : memref<8x128xf32, #tpu.memory_space<vmem>>, vector<8x128xf32>,
    %c0_8 = arith.constant 0 : index
    %c0_9 = arith.constant 0 : index
    %9 = vector.load %arg10[%c0_8, %c0_9] : memref<8x4xf32, #tpu.memory_space<vmem>>, vector<8x4xf32>
    %c0_10 = arith.constant 0 : index
    %c0_11 = arith.constant 0 : index
    %10 = vector.load %arg3[%c0_10, %c0_11] : memref<8x128xf32, #tpu.memory_space<vmem>>, vector<8x128xf32>
    %c0_12 = arith.constant 0 : index
    %c0_13 = arith.constant 0 : index
    %11 = vector.load %arg6[%c0_12, %c0_13] : memref<4x128xf32, #tpu.memory_space<vmem>>, vector<4x128xf32>
    %cst_14 = arith.constant dense<0.000000e+00> : vector<8x4xf32>
    %12 = tpu.matmul %10, %11, %cst_14 {dimension_numbers = #tpu.dot_dimension_numbers<[1], [1], [0], [0], [0, 0, 1, 0], [], []>} : vector<8x128xf32>, vector<4x128xf32>, vector<8x4xf32> -> vector<8x4xf32>
    %13 = arith.addf %9, %12 : vector<8x4xf32>
    %c0_15 = arith.constant 0 : index
    %c0_16 = arith.constant 0 : index
    %14 = vector.load %arg10[%c0_15, %c0_16] : memref<8x4xf32, #tpu.memory_space<vmem>>, vector<8x4xf32>
    tpu.vector_store %arg10[%c0_15, %c0_16], %13 {strides = array<i32>} : memref<8x4xf32, #tpu.memory_space<vmem>>, vector<8x4xf32>,
    %c0_i32_17 = arith.constant 0 : i32
    %15 = arith.cmpi eq, %arg2, %c0_i32_17 : i32
    %16 = arith.extui %15 : i1 to i32
    %c0_i32_18 = arith.constant 0 : i32
    %17 = arith.cmpi ne, %16, %c0_i32_18 : i32
    scf.if %17 {
      %c0_19 = arith.constant 0 : index
      %c0_20 = arith.constant 0 : index
      %18 = vector.load %arg10[%c0_19, %c0_20] : memref<8x4xf32, #tpu.memory_space<vmem>>, vector<8x4xf32>
      %c0_21 = arith.constant 0 : index
      %c0_22 = arith.constant 0 : index
      %19 = vector.load %arg7[%c0_21, %c0_22] : memref<128x4xf32, #tpu.memory_space<vmem>>, vector<128x4xf32>
      %cst_23 = arith.constant dense<0.000000e+00> : vector<8x128xf32>
      %20 = tpu.matmul %18, %19, %cst_23 {dimension_numbers = #tpu.dot_dimension_numbers<[1], [1], [0], [0], [0, 0, 1, 0], [], []>} : vector<8x4xf32>, vector<128x4xf32>, vector<8x128xf32> -> vector<8x128xf32>
      %c0_24 = arith.constant 0 : index
      %c0_25 = arith.constant 0 : index
      %21 = vector.load %arg9[%c0_24, %c0_25] : memref<8x128xf32, #tpu.memory_space<vmem>>, vector<8x128xf32>
      %22 = arith.addf %21, %20 : vector<8x128xf32>
      %c0_26 = arith.constant 0 : index
      %c0_27 = arith.constant 0 : index
      %23 = vector.load %arg5[%c0_26, %c0_27] : memref<1x128xf32, #tpu.memory_space<vmem>>, vector<1x128xf32>
      %24 = vector.broadcast %23 : vector<1x128xf32> to vector<8x128xf32>
      %25 = arith.addf %22, %24 : vector<8x128xf32>
      %c0_28 = arith.constant 0 : index
      %c0_29 = arith.constant 0 : index
      %26 = vector.load %arg8[%c0_28, %c0_29] : memref<8x128xf32, #tpu.memory_space<vmem>>, vector<8x128xf32>
      tpu.vector_store %arg8[%c0_28, %c0_29], %25 {strides = array<i32>} : memref<8x128xf32, #tpu.memory_space<vmem>>, vector<8x128xf32>,
    } else {
    }
    return
  }
  func.func @transform_0(%arg0: i32, %arg1: i32, %arg2: i32) -> (i32, i32) {
    %c0_i32 = arith.constant 0 : i32
    return %arg0, %arg2 : i32, i32
  }
  func.func @transform_1(%arg0: i32, %arg1: i32, %arg2: i32) -> (i32, i32) {
    %c0_i32 = arith.constant 0 : i32
    return %arg1, %arg2 : i32, i32
  }
  func.func @transform_2(%arg0: i32, %arg1: i32, %arg2: i32) -> (i32, i32) {
    %c0_i32 = arith.constant 0 : i32
    %c0_i32_0 = arith.constant 0 : i32
    return %c0_i32, %arg1 : i32, i32
  }
  func.func @transform_3(%arg0: i32, %arg1: i32, %arg2: i32) -> (i32, i32) {
    %c0_i32 = arith.constant 0 : i32
    %c0_i32_0 = arith.constant 0 : i32
    return %c0_i32, %arg2 : i32, i32
  }
  func.func @transform_4(%arg0: i32, %arg1: i32, %arg2: i32) -> (i32, i32) {
    %c0_i32 = arith.constant 0 : i32
    %c0_i32_0 = arith.constant 0 : i32
    return %arg1, %c0_i32 : i32, i32
  }
  func.func @transform_5(%arg0: i32, %arg1: i32, %arg2: i32) -> (i32, i32) {
    %c0_i32 = arith.constant 0 : i32
    return %arg0, %arg1 : i32, i32
  }
}

</mosaic_0001>

<llo_original>
// kernel: tpu_custom_call.1
$region0: #{tpu_custom_call.1}
  #allocation0 [shape = 'u32[]', space=smem, size = 0x4, offset = 0x4, fixed_abs, tag = 'smem constant byte address 0x4 - core index']
  #allocation1 [shape = 'u32[144,128]{1,0:T(1,128)}', space=vmem, size = 0x12000, scoped, tag = 'internal scratch']
  #allocation2 [shape = 'f32[8,128]{1,0:T(8,128)}', space=vmem, size = 0x1000, scoped, tag = 'scratch operand']
  #allocation3 [shape = 'f32[8,4]{1,0:T(8,128)}', space=vmem, size = 0x1000, scoped, tag = 'scratch operand']
  %s0 = inlined_call_operand.hbm [shape: f32[16,128], index: 0, kind: input, shape index: {}]
  %s1 = inlined_call_operand.vmem [shape: f32[128,128], index: 1, kind: input, shape index: {}]
  %s2 = inlined_call_operand.vmem [shape: f32[1,128], index: 2, kind: input, shape index: {}]
  %s3 = inlined_call_operand.vmem [shape: f32[4,128], index: 3, kind: input, shape index: {}]
  %s4 = inlined_call_operand.vmem [shape: f32[128,4], index: 4, kind: input, shape index: {}]
  %s5 = inlined_call_operand.hbm [shape: f32[16,128], index: 5, kind: output, shape index: {}]
  %s6 = sld [smem:[#allocation0]]
  $region65: #{tpu_custom_call.1} parent=0
    _
  %s8 = ssub.s32 1, %s6
  %s9 = scalar_select 0, %s8, %s6
  $region1: #{tpu_custom_call.1} parent=0
    #allocation4 [shape = 'u8[8192]{0}', space=vmem, size = 0x2000, scoped, tag = 'input window, operand 0']
    #allocation5 [shape = 's32[2]{0}', space=sflag, size = 0x8, scoped, tag = 'scoped memory for tpu_custom_call.1']
    #allocation6 [shape = 's32[2]{0}', space=sflag, size = 0x8, scoped, tag = 'scoped memory for tpu_custom_call.1']
    #allocation7 [shape = 'u8[8192]{0}', space=vmem, size = 0x2000, scoped, tag = 'output window, operand 0']
    %10 = vsyncpa [#allocation5], 0
    %s11 = scalar_lea.sflag [#allocation5], 1
    %12 = vsyncpa %s11, 0
    %13 = vsyncpa [#allocation6], 0
    %s14 = scalar_lea.sflag [#allocation6], 1
    %15 = vsyncpa %s14, 0
    loop: start=0, step=1, limit=4
    $region2: #{tpu_custom_call.1} parent=1 // loop_pre_header
      _
    $region3: #{tpu_custom_call.1} parent=1 // loop_header
      %s17 = sphi 0, %s21
      %p18 = scmp.ge.s32.totalorder %s17, 4
      %s24 = sphi 0, %s43
      %s25 = sphi 0, %s39
      %s26 = sphi 0, %s35
      %s27 = sphi 0, %s24
      %s28 = sphi 0, %s25
      %s29 = sphi 0, %s26
      %s30 = sphi 0, %s27
      %s31 = sphi 0, %s28
      %s32 = sphi 0, %s29
      %s48 = sphi 0, %s50
      %s51 = sphi 0, %s48
      %s52 = sphi 0, %s51
      %s68 = sphi 0, %s52
      %s76 = sphi 0, %s78
      %s79 = sphi 0, %s76
      %s80 = sphi 0, %s79
      %s96 = sphi 0, %s80
      %s102 = sphi 0, %s104
      %s105 = sphi 0, %s102
      %s106 = sphi 0, %s105
      %s122 = sphi 0, %s106
      %s128 = sphi 0, %s130
      %s131 = sphi 0, %s128
      %s132 = sphi 0, %s131
      %s148 = sphi 0, %s132
      %s154 = sphi 0, %s156
      %s157 = sphi 0, %s154
      %s158 = sphi 0, %s157
      %s174 = sphi 0, %s158
      %s182 = sphi 0, %s184
      %s185 = sphi 0, %s182
      %s186 = sphi 0, %s185
      %s202 = sphi 0, %s186
    $region4: #{tpu_custom_call.1} parent=1 // loop_header_branch
      %20 = sbr.rel (%p18) target = $region8
    $region5: #{tpu_custom_call.1} parent=1 // loop_body
      %s22 = ssub.s32 %s17, 1
      %s23 = ssub.s32 %s17, 2
      %s33 = sadd.s32 1, %s26
      %p34 = scmp.ge.s32.totalorder %s33, 1
      %s35 = scalar_select %p34, 0, %s33
      %s36 = sadd.s32 1, %s25
      %s37 = scalar_select %p34, %s36, %s25
      %p38 = scmp.ge.s32.totalorder %s37, 1
      %s39 = scalar_select %p38, 0, %s37
      %s40 = sadd.s32 1, %s24
      %s41 = scalar_select %p38, %s40, %s24
      %p42 = scmp.ge.s32.totalorder %s41, 2
      %s43 = scalar_select %p42, 0, %s41
      %s44 = ssub.s32 %s24, %s43
      %s45 = ssub.s32 %s26, %s35
      %s46 = sor.u32 %s44, %s45
      %p47 = scmp.eq.s32.totalorder %s46, 0
      %s49 = sadd.s32 %s48, 1
      %s50 = scalar_select %p47, %s48, %s49
      %p53 = pneg %p47
      %p54 = scmp.eq.s32.totalorder %s17, 1
      %p55 = por %p53, %p54
      %p56 = scmp.ne.s32.totalorder %s48, %s51
      %p57 = scmp.eq.s32.totalorder %s17, 0
      %p58 = por %p56, %p57
      %p59 = scmp.ne.s32.totalorder %s48, %s51
      %p60 = scmp.eq.s32.totalorder %s22, 1
      %p61 = por %p59, %p60
      %p62 = scmp.ne.s32.totalorder %s51, %s52
      %p63 = scmp.eq.s32.totalorder %s22, 0
      %p64 = por %p62, %p63
      %p65 = scmp.ne.s32.totalorder %s51, %s52
      %p66 = scmp.eq.s32.totalorder %s23, 1
      %p67 = por %p65, %p66
      %p69 = scmp.ne.s32.totalorder %s52, %s68
      %p70 = scmp.eq.s32.totalorder %s23, 0
      %p71 = por %p69, %p70
      %s72 = ssub.s32 %s25, %s39
      %s73 = ssub.s32 %s26, %s35
      %s74 = sor.u32 %s72, %s73
      %p75 = scmp.eq.s32.totalorder %s74, 0
      %s77 = sadd.s32 %s76, 1
      %s78 = scalar_select %p75, %s76, %s77
      %p81 = pneg %p75
      %p82 = scmp.eq.s32.totalorder %s17, 1
      %p83 = por %p81, %p82
      %p84 = scmp.ne.s32.totalorder %s76, %s79
      %p85 = scmp.eq.s32.totalorder %s17, 0
      %p86 = por %p84, %p85
      %p87 = scmp.ne.s32.totalorder %s76, %s79
      %p88 = scmp.eq.s32.totalorder %s22, 1
      %p89 = por %p87, %p88
      %p90 = scmp.ne.s32.totalorder %s79, %s80
      %p91 = scmp.eq.s32.totalorder %s22, 0
      %p92 = por %p90, %p91
      %p93 = scmp.ne.s32.totalorder %s79, %s80
      %p94 = scmp.eq.s32.totalorder %s23, 1
      %p95 = por %p93, %p94
      %p97 = scmp.ne.s32.totalorder %s80, %s96
      %p98 = scmp.eq.s32.totalorder %s23, 0
      %p99 = por %p97, %p98
      %s100 = ssub.s32 %s25, %s39
      %p101 = scmp.eq.s32.totalorder %s100, 0
      %s103 = sadd.s32 %s102, 1
      %s104 = scalar_select %p101, %s102, %s103
      %p107 = pneg %p101
      %p108 = scmp.eq.s32.totalorder %s17, 1
      %p109 = por %p107, %p108
      %p110 = scmp.ne.s32.totalorder %s102, %s105
      %p111 = scmp.eq.s32.totalorder %s17, 0
      %p112 = por %p110, %p111
      %p113 = scmp.ne.s32.totalorder %s102, %s105
      %p114 = scmp.eq.s32.totalorder %s22, 1
      %p115 = por %p113, %p114
      %p116 = scmp.ne.s32.totalorder %s105, %s106
      %p117 = scmp.eq.s32.totalorder %s22, 0
      %p118 = por %p116, %p117
      %p119 = scmp.ne.s32.totalorder %s105, %s106
      %p120 = scmp.eq.s32.totalorder %s23, 1
      %p121 = por %p119, %p120
      %p123 = scmp.ne.s32.totalorder %s106, %s122
      %p124 = scmp.eq.s32.totalorder %s23, 0
      %p125 = por %p123, %p124
      %s126 = ssub.s32 %s26, %s35
      %p127 = scmp.eq.s32.totalorder %s126, 0
      %s129 = sadd.s32 %s128, 1
      %s130 = scalar_select %p127, %s128, %s129
      %p133 = pneg %p127
      %p134 = scmp.eq.s32.totalorder %s17, 1
      %p135 = por %p133, %p134
      %p136 = scmp.ne.s32.totalorder %s128, %s131
      %p137 = scmp.eq.s32.totalorder %s17, 0
      %p138 = por %p136, %p137
      %p139 = scmp.ne.s32.totalorder %s128, %s131
      %p140 = scmp.eq.s32.totalorder %s22, 1
      %p141 = por %p139, %p140
      %p142 = scmp.ne.s32.totalorder %s131, %s132
      %p143 = scmp.eq.s32.totalorder %s22, 0
      %p144 = por %p142, %p143
      %p145 = scmp.ne.s32.totalorder %s131, %s132
      %p146 = scmp.eq.s32.totalorder %s23, 1
      %p147 = por %p145, %p146
      %p149 = scmp.ne.s32.totalorder %s132, %s148
      %p150 = scmp.eq.s32.totalorder %s23, 0
      %p151 = por %p149, %p150
      %s152 = ssub.s32 %s25, %s39
      %p153 = scmp.eq.s32.totalorder %s152, 0
      %s155 = sadd.s32 %s154, 1
      %s156 = scalar_select %p153, %s154, %s155
      %p159 = pneg %p153
      %p160 = scmp.eq.s32.totalorder %s17, 1
      %p161 = por %p159, %p160
      %p162 = scmp.ne.s32.totalorder %s154, %s157
      %p163 = scmp.eq.s32.totalorder %s17, 0
      %p164 = por %p162, %p163
      %p165 = scmp.ne.s32.totalorder %s154, %s157
      %p166 = scmp.eq.s32.totalorder %s22, 1
      %p167 = por %p165, %p166
      %p168 = scmp.ne.s32.totalorder %s157, %s158
      %p169 = scmp.eq.s32.totalorder %s22, 0
      %p170 = por %p168, %p169
      %p171 = scmp.ne.s32.totalorder %s157, %s158
      %p172 = scmp.eq.s32.totalorder %s23, 1
      %p173 = por %p171, %p172
      %p175 = scmp.ne.s32.totalorder %s158, %s174
      %p176 = scmp.eq.s32.totalorder %s23, 0
      %p177 = por %p175, %p176
      %s178 = ssub.s32 %s24, %s43
      %s179 = ssub.s32 %s25, %s39
      %s180 = sor.u32 %s178, %s179
      %p181 = scmp.eq.s32.totalorder %s180, 0
      %s183 = sadd.s32 %s182, 1
      %s184 = scalar_select %p181, %s182, %s183
      %p187 = pneg %p181
      %p188 = scmp.eq.s32.totalorder %s17, 1
      %p189 = por %p187, %p188
      %p190 = scmp.ne.s32.totalorder %s182, %s185
      %p191 = scmp.eq.s32.totalorder %s17, 0
      %p192 = por %p190, %p191
      %p193 = scmp.ne.s32.totalorder %s182, %s185
      %p194 = scmp.eq.s32.totalorder %s22, 1
      %p195 = por %p193, %p194
      %p196 = scmp.ne.s32.totalorder %s185, %s186
      %p197 = scmp.eq.s32.totalorder %s22, 0
      %p198 = por %p196, %p197
      %p199 = scmp.ne.s32.totalorder %s185, %s186
      %p200 = scmp.eq.s32.totalorder %s23, 1
      %p201 = por %p199, %p200
      %p203 = scmp.ne.s32.totalorder %s186, %s202
      %p204 = scmp.eq.s32.totalorder %s23, 0
      %p205 = por %p203, %p204
      %p206 = scmp.le.s32.totalorder 1, %s17
      %p207 = scmp.lt.s32.totalorder %s17, 3
      %p208 = pnand %p206, %p207
      %p209 = pneg %p208
      // Predicated region
      $region9: #{tpu_custom_call.1} parent=5 // pred_check
        _
      $region10: #{tpu_custom_call.1} parent=5 // pred_check_branch
        %211 = sbr.rel (%p208) target = $region12
      $region11: #{tpu_custom_call.1} parent=5 // pred_region
        %s212 = ssub.s32 %s17, 1
        // Predicated region
        $region13: #{tpu_custom_call.1} parent=11 // pred_check
          %p213 = pneg %p92
        $region14: #{tpu_custom_call.1} parent=11 // pred_check_branch
          %215 = sbr.rel (%p213) target = $region16
        $region15: #{tpu_custom_call.1} parent=11 // pred_region
          %s216 = smul.u32 16, %s28
          %p217 = scmp.lt.s32.totalorder %s216, 15
          %s218 = scalar_select %p217, %s216, 15
          %p219 = scmp.lt.s32.totalorder %s29, 0
          %s220 = scalar_select %p219, %s29, 0
          %s221 = sadd.s32 %s220, %s218
          %s222 = smul.addr %s221, 8
          %s223 = scalar_lea.vmem %s1, %s222
          %s224 = smul.u32 16, %s28
        $region16: #{tpu_custom_call.1} parent=11 // pred_fallthru
          _
        // Predicated region
        $region17: #{tpu_custom_call.1} parent=11 // pred_check
          %p225 = pneg %p118
        $region18: #{tpu_custom_call.1} parent=11 // pred_check_branch
          %227 = sbr.rel (%p225) target = $region20
        $region19: #{tpu_custom_call.1} parent=11 // pred_region
          %p228 = scmp.lt.s32.totalorder %s28, 0
          %s229 = scalar_select %p228, %s28, 0
          %s230 = scalar_lea.vmem %s2, %s229
        $region20: #{tpu_custom_call.1} parent=11 // pred_fallthru
          _
        // Predicated region
        $region21: #{tpu_custom_call.1} parent=11 // pred_check
          %p231 = pneg %p144
        $region22: #{tpu_custom_call.1} parent=11 // pred_check_branch
          %233 = sbr.rel (%p231) target = $region24
        $region23: #{tpu_custom_call.1} parent=11 // pred_region
          %p234 = scmp.lt.s32.totalorder %s29, 0
          %s235 = scalar_select %p234, %s29, 0
          %s236 = smul.addr %s235, 4
          %s237 = scalar_lea.vmem %s3, %s236
        $region24: #{tpu_custom_call.1} parent=11 // pred_fallthru
          _
        // Predicated region
        $region25: #{tpu_custom_call.1} parent=11 // pred_check
          %p238 = pneg %p170
        $region26: #{tpu_custom_call.1} parent=11 // pred_check_branch
          %240 = sbr.rel (%p238) target = $region28
        $region27: #{tpu_custom_call.1} parent=11 // pred_region
          %s241 = smul.u32 16, %s28
          %p242 = scmp.lt.s32.totalorder %s241, 15
          %s243 = scalar_select %p242, %s241, 15
          %s244 = smul.addr %s243, 8
          %s245 = scalar_lea.vmem %s4, %s244
          %s246 = smul.u32 16, %s28
        $region28: #{tpu_custom_call.1} parent=11 // pred_fallthru
          _
      $region12: #{tpu_custom_call.1} parent=5 // pred_fallthru
        _
      %p247 = scmp.lt.s32.totalorder %s17, 2
      // Predicated region
      $region29: #{tpu_custom_call.1} parent=5 // pred_check
        %p248 = pneg %p247
      $region30: #{tpu_custom_call.1} parent=5 // pred_check_branch
        %250 = sbr.rel (%p248) target = $region32
      $region31: #{tpu_custom_call.1} parent=5 // pred_region
        // Predicated region
        $region33: #{tpu_custom_call.1} parent=31 // pred_check
          %p251 = pneg %p58
        $region34: #{tpu_custom_call.1} parent=31 // pred_check_branch
          %253 = sbr.rel (%p251) target = $region36
        $region35: #{tpu_custom_call.1} parent=31 // pred_region
          %s254 = sand.u32 %s48, 1
          %s255 = scalar_lea.sflag [#allocation5], %s254
          %s256 = sand.u32 %s48, 1
          %s257 = smul.addr %s256, 8
          %s258 = scalar_lea.vmem [#allocation4], %s257
          %s260 = ssub.s32 128, 128
          %261 = vsyncadd %s255, %s260
          %s262 = sadd.s32 %s26, %s24
          %s263 = smul.addr %s262, 128
          %s264 = scalar_lea.hbm %s0, %s263
          %s266 = sshll.u32 %s258, 4
          %s267 = int_to_ptr.vmem [resolvable:$true] %s266
          %269 = dma.hbm_to_vmem [thread:$0]  %s264, 128, %s267, %s255
        $region36: #{tpu_custom_call.1} parent=31 // pred_fallthru
          _
      $region32: #{tpu_custom_call.1} parent=5 // pred_fallthru
        _
      %p270 = scmp.le.s32.totalorder 1, %s17
      %p271 = scmp.lt.s32.totalorder %s17, 3
      %p272 = pnand %p270, %p271
      %p273 = pneg %p272
      // Predicated region
      $region37: #{tpu_custom_call.1} parent=5 // pred_check
        _
      $region38: #{tpu_custom_call.1} parent=5 // pred_check_branch
        %275 = sbr.rel (%p272) target = $region40
      $region39: #{tpu_custom_call.1} parent=5 // pred_region
        %s276 = ssub.s32 %s17, 1
        %s277 = sand.u32 %s51, 1
        %s278 = scalar_lea.sflag [#allocation5], %s277
        %s279 = sand.u32 %s51, 1
        %s280 = smul.addr %s279, 8
        %s281 = scalar_lea.vmem [#allocation4], %s280
        // Predicated region
        $region41: #{tpu_custom_call.1} parent=39 // pred_check
          %p282 = pneg %p64
        $region42: #{tpu_custom_call.1} parent=39 // pred_check_branch
          %284 = sbr.rel (%p282) target = $region44
        $region43: #{tpu_custom_call.1} parent=39 // pred_region
          %285 = dma.done %s278, 128
        $region44: #{tpu_custom_call.1} parent=39 // pred_fallthru
          _
        %s286 = sand.u32 %s51, 1
        %s287 = scalar_lea.sflag [#allocation5], %s286
        %s288 = sand.u32 %s51, 1
        %s289 = smul.addr %s288, 8
        %s290 = scalar_lea.vmem [#allocation4], %s289
        %p291 = pneg %p64
        %p292 = pneg %p61
        %s293 = smul.u32 16, %s28
        %p294 = scmp.lt.s32.totalorder %s293, 15
        %s295 = scalar_select %p294, %s293, 15
        %p296 = scmp.lt.s32.totalorder %s29, 0
        %s297 = scalar_select %p296, %s29, 0
        %s298 = sadd.s32 %s297, %s295
        %s299 = smul.addr %s298, 8
        %s300 = scalar_lea.vmem %s1, %s299
        %p301 = pneg %p92
        %p302 = pneg %p89
        %p303 = scmp.lt.s32.totalorder %s28, 0
        %s304 = scalar_select %p303, %s28, 0
        %s305 = scalar_lea.vmem %s2, %s304
        %p306 = pneg %p118
        %p307 = pneg %p115
        %p308 = scmp.lt.s32.totalorder %s29, 0
        %s309 = scalar_select %p308, %s29, 0
        %s310 = smul.addr %s309, 4
        %s311 = scalar_lea.vmem %s3, %s310
        %p312 = pneg %p144
        %p313 = pneg %p141
        %s314 = smul.u32 16, %s28
        %p315 = scmp.lt.s32.totalorder %s314, 15
        %s316 = scalar_select %p315, %s314, 15
        %s317 = smul.addr %s316, 8
        %s318 = scalar_lea.vmem %s4, %s317
        %p319 = pneg %p170
        %p320 = pneg %p167
        %p321 = pneg %p198
        %p322 = pneg %p195
        %s323 = sand.u32 %s185, 1
        %s324 = scalar_lea.sflag [#allocation6], %s323
        %s325 = sand.u32 %s185, 1
        %s326 = smul.addr %s325, 8
        %s327 = scalar_lea.vmem [#allocation7], %s326
        %s328 = smul.u32 16, %s28
        %p329 = scmp.lt.s32.totalorder %s328, 15
        %s330 = scalar_select %p329, %s328, 15
        %p331 = scmp.lt.s32.totalorder %s29, 0
        %s332 = scalar_select %p331, %s29, 0
        %s333 = sadd.s32 %s332, %s330
        %s334 = smul.addr %s333, 8
        %s335 = scalar_lea.vmem %s1, %s334
        %s336 = smul.u32 16, %s28
        %p337 = scmp.lt.s32.totalorder %s28, 0
        %s338 = scalar_select %p337, %s28, 0
        %s339 = scalar_lea.vmem %s2, %s338
        %p340 = scmp.lt.s32.totalorder %s29, 0
        %s341 = scalar_select %p340, %s29, 0
        %s342 = smul.addr %s341, 4
        %s343 = scalar_lea.vmem %s3, %s342
        %s344 = smul.u32 16, %s28
        %p345 = scmp.lt.s32.totalorder %s344, 15
        %s346 = scalar_select %p345, %s344, 15
        %s347 = smul.addr %s346, 8
        %s348 = scalar_lea.vmem %s4, %s347
        %s349 = smul.u32 16, %s28
        %p350 = scmp.eq.s32.totalorder %s29, 0
        // Predicated region
        $region45: #{tpu_custom_call.1} parent=39 // pred_check
          %p351 = pneg %p350
        $region46: #{tpu_custom_call.1} parent=39 // pred_check_branch
          %353 = sbr.rel (%p351) target = $region48
        $region47: #{tpu_custom_call.1} parent=39 // pred_region
          %354 = vst [vmem:[#allocation2] sm:$0xff] 0.0
          %vm355 = vcmask 31744
          %356 = vst.msk [vmem:[#allocation3] sm:$0xff] %vm355, 0.0
        $region48: #{tpu_custom_call.1} parent=39 // pred_fallthru
          _
        %v357 = vld [vmem:[#allocation2] sm:$0xff]
        %v358 = vld [vmem:[%s281] sm:$0xff]
        %v359 = vld [vmem:[%s335] sm:$0xff]
        %v360 = vld [vmem:[%s335 + $0x8] sm:$0xff]
        %v361 = vld [vmem:[%s335 + $0x10] sm:$0xff]
        %v362 = vld [vmem:[%s335 + $0x18] sm:$0xff]
        %v363 = vld [vmem:[%s335 + $0x20] sm:$0xff]
        %v364 = vld [vmem:[%s335 + $0x28] sm:$0xff]
        %v365 = vld [vmem:[%s335 + $0x30] sm:$0xff]
        %v366 = vld [vmem:[%s335 + $0x38] sm:$0xff]
        %v367 = vld [vmem:[%s335 + $0x40] sm:$0xff]
        %v368 = vld [vmem:[%s335 + $0x48] sm:$0xff]
        %v369 = vld [vmem:[%s335 + $0x50] sm:$0xff]
        %v370 = vld [vmem:[%s335 + $0x58] sm:$0xff]
        %v371 = vld [vmem:[%s335 + $0x60] sm:$0xff]
        %v372 = vld [vmem:[%s335 + $0x68] sm:$0xff]
        %v373 = vld [vmem:[%s335 + $0x70] sm:$0xff]
        %v374 = vld [vmem:[%s335 + $0x78] sm:$0xff]
        %375 = vmatprep.subr.mxu0 0.0
        %376 = vmatpush1.xpose.msra.mxu0 %v374
        %377 = vmatprep.subr.mxu0 0.0
        %378 = vmatpush1.xpose.msra.mxu0 %v373
        %379 = vmatprep.subr.mxu0 0.0
        %380 = vmatpush1.xpose.msra.mxu0 %v372
        %381 = vmatprep.subr.mxu0 0.0
        %382 = vmatpush1.xpose.msra.mxu0 %v371
        %383 = vmatprep.subr.mxu0 0.0
        %384 = vmatpush1.xpose.msra.mxu0 %v370
        %385 = vmatprep.subr.mxu0 0.0
        %386 = vmatpush1.xpose.msra.mxu0 %v369
        %387 = vmatprep.subr.mxu0 0.0
        %388 = vmatpush1.xpose.msra.mxu0 %v368
        %389 = vmatprep.subr.mxu0 0.0
        %390 = vmatpush1.xpose.msra.mxu0 %v367
        %391 = vmatprep.subr.mxu0 0.0
        %392 = vmatpush1.xpose.msra.mxu0 %v366
        %393 = vmatprep.subr.mxu0 0.0
        %394 = vmatpush1.xpose.msra.mxu0 %v365
        %395 = vmatprep.subr.mxu0 0.0
        %396 = vmatpush1.xpose.msra.mxu0 %v364
        %397 = vmatprep.subr.mxu0 0.0
        %398 = vmatpush1.xpose.msra.mxu0 %v363
        %399 = vmatprep.subr.mxu0 0.0
        %400 = vmatpush1.xpose.msra.mxu0 %v362
        %401 = vmatprep.subr.mxu0 0.0
        %402 = vmatpush1.xpose.msra.mxu0 %v361
        %403 = vmatprep.subr.mxu0 0.0
        %404 = vmatpush1.xpose.msra.mxu0 %v360
        %405 = vmatprep.subr.mxu0 0.0
        %406 = vmatpush1.xpose.msra.mxu0 %v359
        %407 = vmatprep.subr.mxu0 0.0
        %408 = vmatpush2.xpose.msra.mxu0 0.0
        %409 = vmatprep.subr.mxu0 0.0
        %410 = vmatpush2.xpose.msra.mxu0 0.0
        %411 = vmatprep.subr.mxu0 0.0
        %412 = vmatpush2.xpose.msra.mxu0 0.0
        %413 = vmatprep.subr.mxu0 0.0
        %414 = vmatpush2.xpose.msra.mxu0 0.0
        %415 = vmatprep.subr.mxu0 0.0
        %416 = vmatpush2.xpose.msra.mxu0 0.0
        %417 = vmatprep.subr.mxu0 0.0
        %418 = vmatpush2.xpose.msra.mxu0 0.0
        %419 = vmatprep.subr.mxu0 0.0
        %420 = vmatpush2.xpose.msra.mxu0 0.0
        %421 = vmatprep.subr.mxu0 0.0
        %422 = vmatpush2.xpose.msra.mxu0 0.0
        %423 = vmatprep.subr.mxu0 0.0
        %424 = vmatpush2.xpose.msra.mxu0 0.0
        %425 = vmatprep.subr.mxu0 0.0
        %426 = vmatpush2.xpose.msra.mxu0 0.0
        %427 = vmatprep.subr.mxu0 0.0
        %428 = vmatpush2.xpose.msra.mxu0 0.0
        %429 = vmatprep.subr.mxu0 0.0
        %430 = vmatpush2.xpose.msra.mxu0 0.0
        %431 = vmatprep.subr.mxu0 0.0
        %432 = vmatpush2.xpose.msra.mxu0 0.0
        %433 = vmatprep.subr.mxu0 0.0
        %434 = vmatpush2.xpose.msra.mxu0 0.0
        %435 = vmatprep.subr.mxu0 0.0
        %436 = vmatpush2.xpose.msra.mxu0 0.0
        %437 = vmatprep.subr.mxu0 0.0
        %438 = vmatpush2.xpose.msra.mxu0 0.0
        %439 = vmatprep.mubr.f32.mxu0 0.0
        %440 = vmatmul.mubr.f32.gmra.mxu0 %v358
        %v441 = vpop.f32.mrf.mxu0
        %v442 = vadd.f32 0.0, %v441
        %v443 = vpop.f32.mrf.mxu0
        %444 = vdwg.mxu0
        %v445 = vadd.f32 %v357, %v442
        %446 = vst [vmem:[#allocation2] sm:$0xff] %v445
        %v447 = vld [vmem:[#allocation3] sm:$0xff]
        %v448 = vld [vmem:[%s281] sm:$0xff]
        %v449 = vld [vmem:[%s343] sm:$0xf]
        %450 = vmatprep.subr.mxu0 0.0
        %451 = vmatpush1.xpose.msra.mxu0 0.0
        %452 = vmatprep.subr.mxu0 0.0
        %453 = vmatpush1.xpose.msra.mxu0 0.0
        %454 = vmatprep.subr.mxu0 0.0
        %455 = vmatpush1.xpose.msra.mxu0 0.0
        %456 = vmatprep.subr.mxu0 0.0
        %457 = vmatpush1.xpose.msra.mxu0 0.0
        %458 = vmatprep.subr.mxu0 0.0
        %459 = vmatpush1.xpose.msra.mxu0 0.0
        %460 = vmatprep.subr.mxu0 0.0
        %461 = vmatpush1.xpose.msra.mxu0 0.0
        %462 = vmatprep.subr.mxu0 0.0
        %463 = vmatpush1.xpose.msra.mxu0 0.0
        %464 = vmatprep.subr.mxu0 0.0
        %465 = vmatpush1.xpose.msra.mxu0 0.0
        %466 = vmatprep.subr.mxu0 0.0
        %467 = vmatpush1.xpose.msra.mxu0 0.0
        %468 = vmatprep.subr.mxu0 0.0
        %469 = vmatpush1.xpose.msra.mxu0 0.0
        %470 = vmatprep.subr.mxu0 0.0
        %471 = vmatpush1.xpose.msra.mxu0 0.0
        %472 = vmatprep.subr.mxu0 0.0
        %473 = vmatpush1.xpose.msra.mxu0 0.0
        %474 = vmatprep.subr.mxu0 0.0
        %475 = vmatpush1.xpose.msra.mxu0 0.0
        %476 = vmatprep.subr.mxu0 0.0
        %477 = vmatpush1.xpose.msra.mxu0 0.0
        %478 = vmatprep.subr.mxu0 0.0
        %479 = vmatpush1.xpose.msra.mxu0 0.0
        %480 = vmatprep.subr.mxu0 0.0
        %481 = vmatpush1.xpose.msra.mxu0 %v449
        %482 = vmatprep.subr.mxu0 0.0
        %483 = vmatpush2.xpose.msra.mxu0 0.0
        %484 = vmatprep.subr.mxu0 0.0
        %485 = vmatpush2.xpose.msra.mxu0 0.0
        %486 = vmatprep.subr.mxu0 0.0
        %487 = vmatpush2.xpose.msra.mxu0 0.0
        %488 = vmatprep.subr.mxu0 0.0
        %489 = vmatpush2.xpose.msra.mxu0 0.0
        %490 = vmatprep.subr.mxu0 0.0
        %491 = vmatpush2.xpose.msra.mxu0 0.0
        %492 = vmatprep.subr.mxu0 0.0
        %493 = vmatpush2.xpose.msra.mxu0 0.0
        %494 = vmatprep.subr.mxu0 0.0
        %495 = vmatpush2.xpose.msra.mxu0 0.0
        %496 = vmatprep.subr.mxu0 0.0
        %497 = vmatpush2.xpose.msra.mxu0 0.0
        %498 = vmatprep.subr.mxu0 0.0
        %499 = vmatpush2.xpose.msra.mxu0 0.0
        %500 = vmatprep.subr.mxu0 0.0
        %501 = vmatpush2.xpose.msra.mxu0 0.0
        %502 = vmatprep.subr.mxu0 0.0
        %503 = vmatpush2.xpose.msra.mxu0 0.0
        %504 = vmatprep.subr.mxu0 0.0
        %505 = vmatpush2.xpose.msra.mxu0 0.0
        %506 = vmatprep.subr.mxu0 0.0
        %507 = vmatpush2.xpose.msra.mxu0 0.0
        %508 = vmatprep.subr.mxu0 0.0
        %509 = vmatpush2.xpose.msra.mxu0 0.0
        %510 = vmatprep.subr.mxu0 0.0
        %511 = vmatpush2.xpose.msra.mxu0 0.0
        %512 = vmatprep.subr.mxu0 0.0
        %513 = vmatpush2.xpose.msra.mxu0 0.0
        %514 = vmatprep.mubr.f32.mxu0 0.0
        %515 = vmatmul.mubr.f32.gmra.mxu0 %v448
        %v516 = vpop.f32.mrf.mxu0
        %v517 = vadd.f32 0.0, %v516
        %v518 = vpop.f32.mrf.mxu0
        %519 = vdwg.mxu0
        %v520 = vadd.f32 %v447, %v517
        %vm521 = vcmask 31744
        %522 = vst.msk [vmem:[#allocation3] sm:$0xff] %vm521, %v520
        // Predicated region
        $region49: #{tpu_custom_call.1} parent=39 // pred_check
          %p523 = pneg %p350
        $region50: #{tpu_custom_call.1} parent=39 // pred_check_branch
          %525 = sbr.rel (%p523) target = $region52
        $region51: #{tpu_custom_call.1} parent=39 // pred_region
          %v526 = vld [vmem:[#allocation3] sm:$0xff]
          %v527 = vld [vmem:[%s348] sm:$0xff]
          %v528 = vld [vmem:[%s348 + $0x8] sm:$0xff]
          %v529 = vld [vmem:[%s348 + $0x10] sm:$0xff]
          %v530 = vld [vmem:[%s348 + $0x18] sm:$0xff]
          %v531 = vld [vmem:[%s348 + $0x20] sm:$0xff]
          %v532 = vld [vmem:[%s348 + $0x28] sm:$0xff]
          %v533 = vld [vmem:[%s348 + $0x30] sm:$0xff]
          %v534 = vld [vmem:[%s348 + $0x38] sm:$0xff]
          %v535 = vld [vmem:[%s348 + $0x40] sm:$0xff]
          %v536 = vld [vmem:[%s348 + $0x48] sm:$0xff]
          %v537 = vld [vmem:[%s348 + $0x50] sm:$0xff]
          %v538 = vld [vmem:[%s348 + $0x58] sm:$0xff]
          %v539 = vld [vmem:[%s348 + $0x60] sm:$0xff]
          %v540 = vld [vmem:[%s348 + $0x68] sm:$0xff]
          %v541 = vld [vmem:[%s348 + $0x70] sm:$0xff]
          %v542 = vld [vmem:[%s348 + $0x78] sm:$0xff]
          %v544 = vsel %vm521, %v526, 0
          %v547 = vsel %vm521, %v527, 0
          %v550 = vsel %vm521, %v528, 0
          %v553 = vsel %vm521, %v529, 0
          %v556 = vsel %vm521, %v530, 0
          %v559 = vsel %vm521, %v531, 0
          %v562 = vsel %vm521, %v532, 0
          %v565 = vsel %vm521, %v533, 0
          %v568 = vsel %vm521, %v534, 0
          %v571 = vsel %vm521, %v535, 0
          %v574 = vsel %vm521, %v536, 0
          %v577 = vsel %vm521, %v537, 0
          %v580 = vsel %vm521, %v538, 0
          %v583 = vsel %vm521, %v539, 0
          %v586 = vsel %vm521, %v540, 0
          %v589 = vsel %vm521, %v541, 0
          %v592 = vsel %vm521, %v542, 0
          %594 = vmatprep.subr.mxu0 0.0
          %595 = vmatpush1.xpose.msra.mxu0 %v592
          %596 = vmatprep.subr.mxu0 0.0
          %597 = vmatpush1.xpose.msra.mxu0 %v589
          %598 = vmatprep.subr.mxu0 0.0
          %599 = vmatpush1.xpose.msra.mxu0 %v586
          %600 = vmatprep.subr.mxu0 0.0
          %601 = vmatpush1.xpose.msra.mxu0 %v583
          %602 = vmatprep.subr.mxu0 0.0
          %603 = vmatpush1.xpose.msra.mxu0 %v580
          %604 = vmatprep.subr.mxu0 0.0
          %605 = vmatpush1.xpose.msra.mxu0 %v577
          %606 = vmatprep.subr.mxu0 0.0
          %607 = vmatpush1.xpose.msra.mxu0 %v574
          %608 = vmatprep.subr.mxu0 0.0
          %609 = vmatpush1.xpose.msra.mxu0 %v571
          %610 = vmatprep.subr.mxu0 0.0
          %611 = vmatpush1.xpose.msra.mxu0 %v568
          %612 = vmatprep.subr.mxu0 0.0
          %613 = vmatpush1.xpose.msra.mxu0 %v565
          %614 = vmatprep.subr.mxu0 0.0
          %615 = vmatpush1.xpose.msra.mxu0 %v562
          %616 = vmatprep.subr.mxu0 0.0
          %617 = vmatpush1.xpose.msra.mxu0 %v559
          %618 = vmatprep.subr.mxu0 0.0
          %619 = vmatpush1.xpose.msra.mxu0 %v556
          %620 = vmatprep.subr.mxu0 0.0
          %621 = vmatpush1.xpose.msra.mxu0 %v553
          %622 = vmatprep.subr.mxu0 0.0
          %623 = vmatpush1.xpose.msra.mxu0 %v550
          %624 = vmatprep.subr.mxu0 0.0
          %625 = vmatpush1.xpose.msra.mxu0 %v547
          %626 = vmatprep.subr.mxu0 0.0
          %627 = vmatpush2.xpose.msra.mxu0 0.0
          %628 = vmatprep.subr.mxu0 0.0
          %629 = vmatpush2.xpose.msra.mxu0 0.0
          %630 = vmatprep.subr.mxu0 0.0
          %631 = vmatpush2.xpose.msra.mxu0 0.0
          %632 = vmatprep.subr.mxu0 0.0
          %633 = vmatpush2.xpose.msra.mxu0 0.0
          %634 = vmatprep.subr.mxu0 0.0
          %635 = vmatpush2.xpose.msra.mxu0 0.0
          %636 = vmatprep.subr.mxu0 0.0
          %637 = vmatpush2.xpose.msra.mxu0 0.0
          %638 = vmatprep.subr.mxu0 0.0
          %639 = vmatpush2.xpose.msra.mxu0 0.0
          %640 = vmatprep.subr.mxu0 0.0
          %641 = vmatpush2.xpose.msra.mxu0 0.0
          %642 = vmatprep.subr.mxu0 0.0
          %643 = vmatpush2.xpose.msra.mxu0 0.0
          %644 = vmatprep.subr.mxu0 0.0
          %645 = vmatpush2.xpose.msra.mxu0 0.0
          %646 = vmatprep.subr.mxu0 0.0
          %647 = vmatpush2.xpose.msra.mxu0 0.0
          %648 = vmatprep.subr.mxu0 0.0
          %649 = vmatpush2.xpose.msra.mxu0 0.0
          %650 = vmatprep.subr.mxu0 0.0
          %651 = vmatpush2.xpose.msra.mxu0 0.0
          %652 = vmatprep.subr.mxu0 0.0
          %653 = vmatpush2.xpose.msra.mxu0 0.0
          %654 = vmatprep.subr.mxu0 0.0
          %655 = vmatpush2.xpose.msra.mxu0 0.0
          %656 = vmatprep.subr.mxu0 0.0
          %657 = vmatpush2.xpose.msra.mxu0 0.0
          %658 = vmatprep.mubr.f32.mxu0 0.0
          %659 = vmatmul.mubr.f32.gmra.mxu0 %v544
          %v660 = vpop.f32.mrf.mxu0
          %v661 = vadd.f32 0.0, %v660
          %v662 = vpop.f32.mrf.mxu0
          %663 = vdwg.mxu0
          %v664 = vld [vmem:[#allocation2] sm:$0xff]
          %v665 = vadd.f32 %v664, %v661
          %v666 = vld [vmem:[%s339] sm:$0x1]
          %v668 = vlaneseq
          %v669 = vshrl.u32 %v668, 7
          %v670 = vsub.s32 0, %v669
          %v671 = vrot.slane %v666, %v670
          %v673 = vadd.f32 %v665, %v671
          %674 = vst [vmem:[%s327] sm:$0xff] %v673
        $region52: #{tpu_custom_call.1} parent=39 // pred_fallthru
          _
        %s675 = sand.u32 %s185, 1
        %s676 = scalar_lea.sflag [#allocation6], %s675
        %s677 = sand.u32 %s185, 1
        %s678 = smul.addr %s677, 8
        %s679 = scalar_lea.vmem [#allocation7], %s678
        // Predicated region
        $region53: #{tpu_custom_call.1} parent=39 // pred_check
          %p680 = pneg %p195
        $region54: #{tpu_custom_call.1} parent=39 // pred_check_branch
          %682 = sbr.rel (%p680) target = $region56
        $region55: #{tpu_custom_call.1} parent=39 // pred_region
          %s684 = ssub.s32 128, 128
          %685 = vsyncadd %s676, %s684
          %s686 = sadd.s32 %s28, %s27
          %s687 = smul.addr %s686, 128
          %s688 = scalar_lea.hbm %s5, %s687
          %s690 = sshll.u32 %s679, 4
          %s691 = int_to_ptr.vmem [resolvable:$true] %s690
          %693 = dma.vmem_to_hbm [thread:$0]  %s691, 128, %s688, %s676
        $region56: #{tpu_custom_call.1} parent=39 // pred_fallthru
          _
      $region40: #{tpu_custom_call.1} parent=5 // pred_fallthru
        _
      %p694 = scmp.le.s32.totalorder 2, %s17
      // Predicated region
      $region57: #{tpu_custom_call.1} parent=5 // pred_check
        %p695 = pneg %p694
      $region58: #{tpu_custom_call.1} parent=5 // pred_check_branch
        %697 = sbr.rel (%p695) target = $region60
      $region59: #{tpu_custom_call.1} parent=5 // pred_region
        %s698 = ssub.s32 %s17, 2
        // Predicated region
        $region61: #{tpu_custom_call.1} parent=59 // pred_check
          %p699 = pneg %p201
        $region62: #{tpu_custom_call.1} parent=59 // pred_check_branch
          %701 = sbr.rel (%p699) target = $region64
        $region63: #{tpu_custom_call.1} parent=59 // pred_region
          %s702 = sand.u32 %s186, 1
          %s703 = scalar_lea.sflag [#allocation6], %s702
          %s704 = sand.u32 %s186, 1
          %s705 = smul.addr %s704, 8
          %s706 = scalar_lea.vmem [#allocation7], %s705
          %707 = dma.done %s703, 128
        $region64: #{tpu_custom_call.1} parent=59 // pred_fallthru
          _
      $region60: #{tpu_custom_call.1} parent=5 // pred_fallthru
        _
    $region6: #{tpu_custom_call.1} parent=1 // loop_footer
      %s21 = sadd.s32 1, %s17
    $region7: #{tpu_custom_call.1} parent=1 // loop_footer_branch
      %16 = sbr.rel target = $region3
    $region8: #{tpu_custom_call.1} parent=1 // loop_exit
      _
    %708 = vsyncpa [#allocation5], 1
    %s709 = scalar_lea.sflag [#allocation5], 1
    %710 = vsyncpa %s709, 1
    %711 = vsyncpa [#allocation6], 1
    %s712 = scalar_lea.sflag [#allocation6], 1
    %713 = vsyncpa %s712, 1

</llo_original>
